<compile_context>
chip_gen: v5e
topology: v5e:2x2
jax: 0.10.0
libtpu: 0.0.40
codegen_flags: <defaults>
</compile_context>

<pallas_src>
import functools

import jax
import jax.numpy as jnp
from jax import lax
from jax.experimental import pallas as pl
from jax.experimental.pallas import tpu as pltpu


def _round_up(x, m):
    return ((x + m - 1) // m) * m


def _loss_kernel(x_ref, t_ref, out_ref, d_pad, vm_pad, *, Hc, Wc, Hp, Wp,
                 vmin, vmax, weight_scale):
    """Per-image partial sums.

    x_ref, t_ref : (Hc, Wc) f32 unpadded image blocks (batch/channel squeezed).
    out_ref      : (4, Wp) f32 lane-dense partials:
                   [sum gradloss*gvm, sum gvm, sum weights*l1, sum vm] per lane.
    d_pad, vm_pad: (Hp, Wp) f32 VMEM scratch with a zero border (>=1 zero row
                   above/below the image, >=1 zero column to its right).
    """
    # Zero the padded scratch every step (one cheap VPU pass; keeps the kernel
    # correct under megacore "parallel" sharding), then write the interior.
    d_pad[...] = jnp.zeros_like(d_pad)
    vm_pad[...] = jnp.zeros_like(vm_pad)

    x = x_ref[...]                                     # (Hc, Wc)
    t = t_ref[...]                                     # (Hc, Wc)
    d_pad[1:Hc + 1, 0:Wc] = x - t
    vm_pad[1:Hc + 1, 0:Wc] = jnp.where((t <= vmax) & (t >= vmin), 1.0, 0.0)

    d = d_pad[...]                                     # (Hp, Wp), zero border
    vm = vm_pad[...]                                   # (Hp, Wp), zero border

    def sep_sobel8(p):
        # Separable 3x3 sobel, unscaled by 1/8.
        #   8*sobel_x = [1,2,1]^T (x) [1,0,-1]
        #   8*sobel_y = [1,0,-1]^T (x) [1,2,1]
        # Rolls wrap onto all-zero pad rows/columns, which reproduces the
        # Conv2d zero padding of the reference module exactly.
        up = pltpu.roll(p, shift=1, axis=0)            # p[r-1]
        dn = pltpu.roll(p, shift=Hp - 1, axis=0)       # p[r+1]
        a = up + 2.0 * p + dn                          # vertical [1,2,1]
        b = up - dn                                    # vertical [1,0,-1]
        a_l = pltpu.roll(a, shift=1, axis=1)           # a[c-1]
        a_r = pltpu.roll(a, shift=Wp - 1, axis=1)      # a[c+1]
        b_l = pltpu.roll(b, shift=1, axis=1)
        b_r = pltpu.roll(b, shift=Wp - 1, axis=1)
        gx8 = a_l - a_r                                # 8 * sobel_x(p)
        gy8 = b_l + 2.0 * b + b_r                      # 8 * sobel_y(p)
        return gx8, gy8

    # Sobel of the difference (sobel is linear) + sobel of the valid mask.
    gxd8, gyd8 = sep_sobel8(d)
    mgx8, mgy8 = sep_sobel8(vm)        # exact small integers in f32

    # The 1/8 scale does not change zero-ness, so compare the x8 values to 0.
    gvm = jnp.where((mgx8 == 0.0) & (mgy8 == 0.0), vm, 0.0)

    gradloss = 0.125 * (jnp.abs(gxd8) + jnp.abs(gyd8))
    weights = weight_scale * gradloss + 1.0
    l1 = jnp.abs(d) * vm               # vm in {0,1}  =>  |d*vm| == |d|*vm

    # One sublane reduce per term into a lane-dense (4, Wp) partial; the final
    # lane reduction happens in the wrapper.  All pad rows/cols contribute 0.
    out_ref[0:1, :] = jnp.sum(gradloss * gvm, axis=0, keepdims=True)
    out_ref[1:2, :] = jnp.sum(gvm, axis=0, keepdims=True)
    out_ref[2:3, :] = jnp.sum(weights * l1, axis=0, keepdims=True)
    out_ref[3:4, :] = jnp.sum(vm, axis=0, keepdims=True)


def gradient_weighted_depth_loss(inp, tgt, *, crop_fraction=0.0, vmin=0.0,
                                 vmax=1.0, limit=10.0, weight_scale=1.0):
    """inp, tgt: (B, 1, H, W) float32, NCHW (same layout as the PyTorch module)."""
    B, C, H, W = inp.shape
    assert C == 1, "sobel convs are Conv2d(1, 1, 3); channel dim must be 1"

    hc = int(H * crop_fraction)
    wc = int(W * crop_fraction)
    if crop_fraction > 0:
        inp = inp[:, :, hc:H - hc, wc:W - wc]
        tgt = tgt[:, :, hc:H - hc, wc:W - wc]
    Hc, Wc = inp.shape[2], inp.shape[3]

    Hp = _round_up(Hc + 2, 8)          # sublane-aligned, >= 1 zero row top+bottom
    Wp = _round_up(Wc + 1, 128)        # lane-aligned, >= 1 zero column on the right

    x = inp.astype(jnp.float32)        # no wrapper-side pad / HBM round trip
    t = tgt.astype(jnp.float32)

    kernel = functools.partial(
        _loss_kernel, Hc=Hc, Wc=Wc, Hp=Hp, Wp=Wp,
        vmin=float(vmin), vmax=float(vmax), weight_scale=float(weight_scale))

    # Scoped-VMEM budget: double-buffered input pair + 2 padded scratches +
    # ~12 full-size f32 temporaries, with headroom; clamp to sane bounds.
    vmem_bytes = 4 * (2 * 2 * Hc * Wc + 16 * Hp * Wp) + (2 << 20)
    vmem_limit = int(min(100 * 1024 * 1024, max(32 * 1024 * 1024, vmem_bytes)))

    cost = pl.CostEstimate(
        flops=int(40 * B * Hp * Wp),
        transcendentals=0,
        bytes_accessed=int(2 * 4 * B * Hc * Wc + 4 * B * 4 * Wp))

    partial = pl.pallas_call(
        kernel,
        out_shape=jax.ShapeDtypeStruct((B, 4, Wp), jnp.float32),
        grid=(B,),
        in_specs=[
            pl.BlockSpec((None, None, Hc, Wc), lambda b: (b, 0, 0, 0)),
            pl.BlockSpec((None, None, Hc, Wc), lambda b: (b, 0, 0, 0)),
        ],
        out_specs=pl.BlockSpec((None, 4, Wp), lambda b: (b, 0, 0)),
        scratch_shapes=[
            pltpu.VMEM((Hp, Wp), jnp.float32),   # d_pad
            pltpu.VMEM((Hp, Wp), jnp.float32),   # vm_pad
        ],
        compiler_params=pltpu.CompilerParams(
            dimension_semantics=("parallel",),
            vmem_limit_bytes=vmem_limit),
        cost_estimate=cost,
    )(x, t)

    sums = jnp.sum(partial, axis=(0, 2))                 # (4,)
    gl = sums[0] / jnp.maximum(sums[1], 1.0)
    l = sums[2] / jnp.maximum(sums[3], 1.0)
    loss = l + gl
    if limit is not None:
        loss = jnp.minimum(loss, limit)  # torch.clamp(loss, max=limit) when > limit
    return loss


def _ref_loss(inp, tgt, *, vmin=0.0, vmax=1.0, limit=10.0, weight_scale=1.0):
    """Pure-JAX reference (uses lax.conv) for validating the kernel."""
    sobel_x = (jnp.array([[1, 0, -1], [2, 0, -2], [1, 0, -1]],
                         jnp.float32) / 8.0).reshape(1, 1, 3, 3)
    sobel_y = (jnp.array([[1, 2, 1], [0, 0, 0], [-1, -2, -1]],
                         jnp.float32) / 8.0).reshape(1, 1, 3, 3)

    def conv(a, w):
        return lax.conv_general_dilated(
            a, w, (1, 1), ((1, 1), (1, 1)),
            dimension_numbers=("NCHW", "OIHW", "NCHW"))

    vm = ((tgt <= vmax) & (tgt >= vmin)).astype(jnp.float32)
    igx, igy = conv(inp, sobel_x), conv(inp, sobel_y)
    tgx, tgy = conv(tgt, sobel_x), conv(tgt, sobel_y)
    mgx, mgy = conv(vm, sobel_x), conv(vm, sobel_y)
    gvm = ((mgx == 0) & (mgy == 0)).astype(jnp.float32) * vm
    gradloss = jnp.abs(igx - tgx) + jnp.abs(igy - tgy)
    weights = weight_scale * gradloss + 1.0
    gl = jnp.sum(gradloss * gvm) / jnp.maximum(jnp.sum(gvm), 1.0)
    l1 = jnp.abs((inp - tgt) * vm)
    l = jnp.sum(weights * l1) / jnp.maximum(jnp.sum(vm), 1.0)
    return jnp.minimum(l + gl, limit)


if __name__ == "__main__":
    key = jax.random.PRNGKey(0)
    k1, k2 = jax.random.split(key)
    B, C, H, W = 2, 1, 16, 16
    # target outside [vmin, vmax] in places so the valid mask is non-trivial.
    inp = jax.random.uniform(k1, (B, C, H, W), jnp.float32, -0.25, 1.25)
    tgt = jax.random.uniform(k2, (B, C, H, W), jnp.float32, -0.25, 1.25)

    loss = gradient_weighted_depth_loss(inp, tgt, crop_fraction=0.0, vmin=0.0,
                                        vmax=1.0, limit=10.0, weight_scale=1.0)
    loss = jax.block_until_ready(loss)

    ref = _ref_loss(inp, tgt, vmin=0.0, vmax=1.0, limit=10.0, weight_scale=1.0)
    assert abs(float(loss) - float(ref)) < 1e-3, (float(loss), float(ref))
    print("KERNEL_OK")
</pallas_src>

<mosaic_0001>
module attributes {stable_mosaic.version = 11 : i64} {
  func.func @_loss_kernel(%arg0: i32, %arg1: memref<1x1x16x16xf32, #tpu.memory_space<vmem>>, %arg2: memref<1x1x16x16xf32, #tpu.memory_space<vmem>>, %arg3: memref<1x4x128xf32, #tpu.memory_space<vmem>>, %arg4: memref<24x128xf32, #tpu.memory_space<vmem>>, %arg5: memref<24x128xf32, #tpu.memory_space<vmem>>) attributes {dimension_semantics = [#tpu.dimension_semantics<parallel>], iteration_bounds = array<i64: 2>, scalar_prefetch = 0 : i64, scratch_operands = 2 : i64, tpu.core_type = #tpu.core_type<tc>, window_params = [{transform_indices = @transform_0, window_bounds = array<i64: 1, 1, 16, 16>}, {transform_indices = @transform_1, window_bounds = array<i64: 1, 1, 16, 16>}, {transform_indices = @transform_2, window_bounds = array<i64: 1, 4, 128>}]} {
    %cst = arith.constant 0.000000e+00 : f32
    %0 = vector.broadcast %cst : f32 to vector<24x128xf32>
    %c0 = arith.constant 0 : index
    %c0_0 = arith.constant 0 : index
    %1 = vector.load %arg4[%c0, %c0_0] : memref<24x128xf32, #tpu.memory_space<vmem>>, vector<24x128xf32>
    tpu.vector_store %arg4[%c0, %c0_0], %0 {strides = array<i32>} : memref<24x128xf32, #tpu.memory_space<vmem>>, vector<24x128xf32>,
    %cst_1 = arith.constant 0.000000e+00 : f32
    %2 = vector.broadcast %cst_1 : f32 to vector<24x128xf32>
    %c0_2 = arith.constant 0 : index
    %c0_3 = arith.constant 0 : index
    %3 = vector.load %arg5[%c0_2, %c0_3] : memref<24x128xf32, #tpu.memory_space<vmem>>, vector<24x128xf32>
    tpu.vector_store %arg5[%c0_2, %c0_3], %2 {strides = array<i32>} : memref<24x128xf32, #tpu.memory_space<vmem>>, vector<24x128xf32>,
    %c0_4 = arith.constant 0 : index
    %c0_5 = arith.constant 0 : index
    %c0_6 = arith.constant 0 : index
    %c0_7 = arith.constant 0 : index
    %4 = vector.load %arg1[%c0_4, %c0_5, %c0_6, %c0_7] : memref<1x1x16x16xf32, #tpu.memory_space<vmem>>, vector<1x1x16x16xf32>
    %5 = vector.shape_cast %4 : vector<1x1x16x16xf32> to vector<16x16xf32>
    %c0_8 = arith.constant 0 : index
    %c0_9 = arith.constant 0 : index
    %c0_10 = arith.constant 0 : index
    %c0_11 = arith.constant 0 : index
    %6 = vector.load %arg2[%c0_8, %c0_9, %c0_10, %c0_11] : memref<1x1x16x16xf32, #tpu.memory_space<vmem>>, vector<1x1x16x16xf32>
    %7 = vector.shape_cast %6 : vector<1x1x16x16xf32> to vector<16x16xf32>
    %8 = arith.subf %5, %7 : vector<16x16xf32>
    %c1 = arith.constant 1 : index
    %c0_12 = arith.constant 0 : index
    %9 = vector.load %arg4[%c1, %c0_12] : memref<24x128xf32, #tpu.memory_space<vmem>>, vector<16x16xf32>
    tpu.vector_store %arg4[%c1, %c0_12], %8 {strides = array<i32>} : memref<24x128xf32, #tpu.memory_space<vmem>>, vector<16x16xf32>,
    %cst_13 = arith.constant 1.000000e+00 : f32
    %10 = vector.broadcast %cst_13 : f32 to vector<16x16xf32>
    %11 = arith.cmpf ole, %7, %10 : vector<16x16xf32>
    %cst_14 = arith.constant 0.000000e+00 : f32
    %12 = vector.broadcast %cst_14 : f32 to vector<16x16xf32>
    %13 = arith.cmpf oge, %7, %12 : vector<16x16xf32>
    %14 = arith.andi %11, %13 : vector<16x16xi1>
    %cst_15 = arith.constant 1.000000e+00 : f32
    %cst_16 = arith.constant 0.000000e+00 : f32
    %15 = vector.broadcast %cst_15 : f32 to vector<16x16xf32>
    %16 = vector.broadcast %cst_16 : f32 to vector<16x16xf32>
    %17 = arith.select %14, %15, %16 : vector<16x16xi1>, vector<16x16xf32>
    %c1_17 = arith.constant 1 : index
    %c0_18 = arith.constant 0 : index
    %18 = vector.load %arg5[%c1_17, %c0_18] : memref<24x128xf32, #tpu.memory_space<vmem>>, vector<16x16xf32>
    tpu.vector_store %arg5[%c1_17, %c0_18], %17 {strides = array<i32>} : memref<24x128xf32, #tpu.memory_space<vmem>>, vector<16x16xf32>,
    %c0_19 = arith.constant 0 : index
    %c0_20 = arith.constant 0 : index
    %19 = vector.load %arg4[%c0_19, %c0_20] : memref<24x128xf32, #tpu.memory_space<vmem>>, vector<24x128xf32>
    %c0_21 = arith.constant 0 : index
    %c0_22 = arith.constant 0 : index
    %20 = vector.load %arg5[%c0_21, %c0_22] : memref<24x128xf32, #tpu.memory_space<vmem>>, vector<24x128xf32>
    %c1_i32 = arith.constant 1 : i32
    %21 = tpu.dynamic_rotate %19 by %c1_i32 dim 0 : vector<24x128xf32>, i32 -> vector<24x128xf32>
    %c23_i32 = arith.constant 23 : i32
    %22 = tpu.dynamic_rotate %19 by %c23_i32 dim 0 : vector<24x128xf32>, i32 -> vector<24x128xf32>
    %cst_23 = arith.constant 2.000000e+00 : f32
    %23 = vector.broadcast %cst_23 : f32 to vector<24x128xf32>
    %24 = arith.mulf %23, %19 : vector<24x128xf32>
    %25 = arith.addf %21, %24 : vector<24x128xf32>
    %26 = arith.addf %25, %22 : vector<24x128xf32>
    %27 = arith.subf %21, %22 : vector<24x128xf32>
    %c1_i32_24 = arith.constant 1 : i32
    %28 = tpu.dynamic_rotate %26 by %c1_i32_24 dim 1 : vector<24x128xf32>, i32 -> vector<24x128xf32>
    %c127_i32 = arith.constant 127 : i32
    %29 = tpu.dynamic_rotate %26 by %c127_i32 dim 1 : vector<24x128xf32>, i32 -> vector<24x128xf32>
    %c1_i32_25 = arith.constant 1 : i32
    %30 = tpu.dynamic_rotate %27 by %c1_i32_25 dim 1 : vector<24x128xf32>, i32 -> vector<24x128xf32>
    %c127_i32_26 = arith.constant 127 : i32
    %31 = tpu.dynamic_rotate %27 by %c127_i32_26 dim 1 : vector<24x128xf32>, i32 -> vector<24x128xf32>
    %32 = arith.subf %28, %29 : vector<24x128xf32>
    %cst_27 = arith.constant 2.000000e+00 : f32
    %33 = vector.broadcast %cst_27 : f32 to vector<24x128xf32>
    %34 = arith.mulf %33, %27 : vector<24x128xf32>
    %35 = arith.addf %30, %34 : vector<24x128xf32>
    %36 = arith.addf %35, %31 : vector<24x128xf32>
    %c1_i32_28 = arith.constant 1 : i32
    %37 = tpu.dynamic_rotate %20 by %c1_i32_28 dim 0 : vector<24x128xf32>, i32 -> vector<24x128xf32>
    %c23_i32_29 = arith.constant 23 : i32
    %38 = tpu.dynamic_rotate %20 by %c23_i32_29 dim 0 : vector<24x128xf32>, i32 -> vector<24x128xf32>
    %cst_30 = arith.constant 2.000000e+00 : f32
    %39 = vector.broadcast %cst_30 : f32 to vector<24x128xf32>
    %40 = arith.mulf %39, %20 : vector<24x128xf32>
    %41 = arith.addf %37, %40 : vector<24x128xf32>
    %42 = arith.addf %41, %38 : vector<24x128xf32>
    %43 = arith.subf %37, %38 : vector<24x128xf32>
    %c1_i32_31 = arith.constant 1 : i32
    %44 = tpu.dynamic_rotate %42 by %c1_i32_31 dim 1 : vector<24x128xf32>, i32 -> vector<24x128xf32>
    %c127_i32_32 = arith.constant 127 : i32
    %45 = tpu.dynamic_rotate %42 by %c127_i32_32 dim 1 : vector<24x128xf32>, i32 -> vector<24x128xf32>
    %c1_i32_33 = arith.constant 1 : i32
    %46 = tpu.dynamic_rotate %43 by %c1_i32_33 dim 1 : vector<24x128xf32>, i32 -> vector<24x128xf32>
    %c127_i32_34 = arith.constant 127 : i32
    %47 = tpu.dynamic_rotate %43 by %c127_i32_34 dim 1 : vector<24x128xf32>, i32 -> vector<24x128xf32>
    %48 = arith.subf %44, %45 : vector<24x128xf32>
    %cst_35 = arith.constant 2.000000e+00 : f32
    %49 = vector.broadcast %cst_35 : f32 to vector<24x128xf32>
    %50 = arith.mulf %49, %43 : vector<24x128xf32>
    %51 = arith.addf %46, %50 : vector<24x128xf32>
    %52 = arith.addf %51, %47 : vector<24x128xf32>
    %cst_36 = arith.constant 0.000000e+00 : f32
    %53 = vector.broadcast %cst_36 : f32 to vector<24x128xf32>
    %54 = arith.cmpf oeq, %48, %53 : vector<24x128xf32>
    %cst_37 = arith.constant 0.000000e+00 : f32
    %55 = vector.broadcast %cst_37 : f32 to vector<24x128xf32>
    %56 = arith.cmpf oeq, %52, %55 : vector<24x128xf32>
    %57 = arith.andi %54, %56 : vector<24x128xi1>
    %cst_38 = arith.constant 0.000000e+00 : f32
    %58 = vector.broadcast %cst_38 : f32 to vector<24x128xf32>
    %59 = arith.select %57, %20, %58 : vector<24x128xi1>, vector<24x128xf32>
    %60 = math.absf %32 : vector<24x128xf32>
    %61 = math.absf %36 : vector<24x128xf32>
    %62 = arith.addf %60, %61 : vector<24x128xf32>
    %cst_39 = arith.constant 1.250000e-01 : f32
    %63 = vector.broadcast %cst_39 : f32 to vector<24x128xf32>
    %64 = arith.mulf %63, %62 : vector<24x128xf32>
    %cst_40 = arith.constant 1.000000e+00 : f32
    %65 = vector.broadcast %cst_40 : f32 to vector<24x128xf32>
    %66 = arith.mulf %65, %64 : vector<24x128xf32>
    %cst_41 = arith.constant 1.000000e+00 : f32
    %67 = vector.broadcast %cst_41 : f32 to vector<24x128xf32>
    %68 = arith.addf %66, %67 : vector<24x128xf32>
    %69 = math.absf %19 : vector<24x128xf32>
    %70 = arith.mulf %69, %20 : vector<24x128xf32>
    %71 = arith.mulf %64, %59 : vector<24x128xf32>
    %cst_42 = arith.constant dense<0.000000e+00> : vector<128xf32>
    %72 = vector.multi_reduction <add>, %71, %cst_42 [0] : vector<24x128xf32> to vector<128xf32>
    %73 = vector.shape_cast %72 : vector<128xf32> to vector<1x128xf32>
    %c0_43 = arith.constant 0 : index
    %c0_44 = arith.constant 0 : index
    %c0_45 = arith.constant 0 : index
    %74 = vector.load %arg3[%c0_43, %c0_44, %c0_45] : memref<1x4x128xf32, #tpu.memory_space<vmem>>, vector<1x1x128xf32>
    %75 = vector.shape_cast %74 : vector<1x1x128xf32> to vector<1x128xf32>
    %76 = vector.shape_cast %73 : vector<1x128xf32> to vector<1x1x128xf32>
    tpu.vector_store %arg3[%c0_43, %c0_44, %c0_45], %76 {strides = array<i32>} : memref<1x4x128xf32, #tpu.memory_space<vmem>>, vector<1x1x128xf32>,
    %cst_46 = arith.constant dense<0.000000e+00> : vector<128xf32>
    %77 = vector.multi_reduction <add>, %59, %cst_46 [0] : vector<24x128xf32> to vector<128xf32>
    %78 = vector.shape_cast %77 : vector<128xf32> to vector<1x128xf32>
    %c0_47 = arith.constant 0 : index
    %c1_48 = arith.constant 1 : index
    %c0_49 = arith.constant 0 : index
    %79 = vector.load %arg3[%c0_47, %c1_48, %c0_49] : memref<1x4x128xf32, #tpu.memory_space<vmem>>, vector<1x1x128xf32>
    %80 = vector.shape_cast %79 : vector<1x1x128xf32> to vector<1x128xf32>
    %81 = vector.shape_cast %78 : vector<1x128xf32> to vector<1x1x128xf32>
    tpu.vector_store %arg3[%c0_47, %c1_48, %c0_49], %81 {strides = array<i32>} : memref<1x4x128xf32, #tpu.memory_space<vmem>>, vector<1x1x128xf32>,
    %82 = arith.mulf %68, %70 : vector<24x128xf32>
    %cst_50 = arith.constant dense<0.000000e+00> : vector<128xf32>
    %83 = vector.multi_reduction <add>, %82, %cst_50 [0] : vector<24x128xf32> to vector<128xf32>
    %84 = vector.shape_cast %83 : vector<128xf32> to vector<1x128xf32>
    %c0_51 = arith.constant 0 : index
    %c2 = arith.constant 2 : index
    %c0_52 = arith.constant 0 : index
    %85 = vector.load %arg3[%c0_51, %c2, %c0_52] : memref<1x4x128xf32, #tpu.memory_space<vmem>>, vector<1x1x128xf32>
    %86 = vector.shape_cast %85 : vector<1x1x128xf32> to vector<1x128xf32>
    %87 = vector.shape_cast %84 : vector<1x128xf32> to vector<1x1x128xf32>
    tpu.vector_store %arg3[%c0_51, %c2, %c0_52], %87 {strides = array<i32>} : memref<1x4x128xf32, #tpu.memory_space<vmem>>, vector<1x1x128xf32>,
    %cst_53 = arith.constant dense<0.000000e+00> : vector<128xf32>
    %88 = vector.multi_reduction <add>, %20, %cst_53 [0] : vector<24x128xf32> to vector<128xf32>
    %89 = vector.shape_cast %88 : vector<128xf32> to vector<1x128xf32>
    %c0_54 = arith.constant 0 : index
    %c3 = arith.constant 3 : index
    %c0_55 = arith.constant 0 : index
    %90 = vector.load %arg3[%c0_54, %c3, %c0_55] : memref<1x4x128xf32, #tpu.memory_space<vmem>>, vector<1x1x128xf32>
    %91 = vector.shape_cast %90 : vector<1x1x128xf32> to vector<1x128xf32>
    %92 = vector.shape_cast %89 : vector<1x128xf32> to vector<1x1x128xf32>
    tpu.vector_store %arg3[%c0_54, %c3, %c0_55], %92 {strides = array<i32>} : memref<1x4x128xf32, #tpu.memory_space<vmem>>, vector<1x1x128xf32>,
    return
  }
  func.func @transform_0(%arg0: i32) -> (i32, i32, i32, i32) {
    %c0_i32 = arith.constant 0 : i32
    %c0_i32_0 = arith.constant 0 : i32
    %c0_i32_1 = arith.constant 0 : i32
    %c0_i32_2 = arith.constant 0 : i32
    return %arg0, %c0_i32, %c0_i32_0, %c0_i32_1 : i32, i32, i32, i32
  }
  func.func @transform_1(%arg0: i32) -> (i32, i32, i32, i32) {
    %c0_i32 = arith.constant 0 : i32
    %c0_i32_0 = arith.constant 0 : i32
    %c0_i32_1 = arith.constant 0 : i32
    %c0_i32_2 = arith.constant 0 : i32
    return %arg0, %c0_i32, %c0_i32_0, %c0_i32_1 : i32, i32, i32, i32
  }
  func.func @transform_2(%arg0: i32) -> (i32, i32, i32) {
    %c0_i32 = arith.constant 0 : i32
    %c0_i32_0 = arith.constant 0 : i32
    %c0_i32_1 = arith.constant 0 : i32
    return %arg0, %c0_i32, %c0_i32_0 : i32, i32, i32
  }
}

</mosaic_0001>

<llo_original>
// kernel: tpu_custom_call.1
$region0: #{tpu_custom_call.1}
  #allocation0 [shape = 'u32[]', space=smem, size = 0x4, offset = 0x4, fixed_abs, tag = 'smem constant byte address 0x4 - core index']
  #allocation1 [shape = 'u32[72,128]{1,0:T(1,128)}', space=vmem, size = 0x9000, scoped, tag = 'internal scratch']
  #allocation2 [shape = 'f32[24,128]{1,0:T(8,128)}', space=vmem, size = 0x3000, scoped, tag = 'scratch operand']
  #allocation3 [shape = 'f32[24,128]{1,0:T(8,128)}', space=vmem, size = 0x3000, scoped, tag = 'scratch operand']
  %s0 = inlined_call_operand.hbm [shape: f32[2,1,16,16], index: 0, kind: input, shape index: {}]
  %s1 = inlined_call_operand.hbm [shape: f32[2,1,16,16], index: 1, kind: input, shape index: {}]
  %s2 = inlined_call_operand.hbm [shape: f32[2,4,128], index: 2, kind: output, shape index: {}]
  %s3 = sld [smem:[#allocation0]]
  $region49: #{tpu_custom_call.1} parent=0
    _
  %s5 = ssub.s32 1, %s3
  %s6 = scalar_select 0, %s5, %s3
  $region1: #{tpu_custom_call.1} parent=0
    #allocation4 [shape = 'u8[16384]{0}', space=vmem, size = 0x4000, scoped, tag = 'input window, operand 0']
    #allocation5 [shape = 's32[2]{0}', space=sflag, size = 0x8, scoped, tag = 'scoped memory for tpu_custom_call.1']
    #allocation6 [shape = 's32[2]{0}', space=sflag, size = 0x8, scoped, tag = 'scoped memory for tpu_custom_call.1']
    #allocation7 [shape = 'u8[16384]{0}', space=vmem, size = 0x4000, scoped, tag = 'input window, operand 1']
    #allocation8 [shape = 's32[2]{0}', space=sflag, size = 0x8, scoped, tag = 'scoped memory for tpu_custom_call.1']
    #allocation9 [shape = 'u8[4096]{0}', space=vmem, size = 0x1000, scoped, tag = 'output window, operand 0']
    %7 = vsyncpa [#allocation5], 0
    %s8 = scalar_lea.sflag [#allocation5], 1
    %9 = vsyncpa %s8, 0
    %10 = vsyncpa [#allocation8], 0
    %s11 = scalar_lea.sflag [#allocation8], 1
    %12 = vsyncpa %s11, 0
    %13 = vsyncpa [#allocation6], 0
    %s14 = scalar_lea.sflag [#allocation6], 1
    %15 = vsyncpa %s14, 0
    loop: start=0, step=1, limit=4
    $region2: #{tpu_custom_call.1} parent=1 // loop_pre_header
      _
    $region3: #{tpu_custom_call.1} parent=1 // loop_header
      %s17 = sphi 0, %s21
      %p18 = scmp.ge.s32.totalorder %s17, 4
      %s27 = sphi 0, %s29
      %s30 = sphi 0, %s27
      %s31 = sphi 0, %s30
      %s47 = sphi 0, %s31
      %s53 = sphi 0, %s55
      %s56 = sphi 0, %s53
      %s57 = sphi 0, %s56
      %s73 = sphi 0, %s57
      %s79 = sphi 0, %s81
      %s82 = sphi 0, %s79
      %s83 = sphi 0, %s82
      %s99 = sphi 0, %s83
    $region4: #{tpu_custom_call.1} parent=1 // loop_header_branch
      %20 = sbr.rel (%p18) target = $region8
    $region5: #{tpu_custom_call.1} parent=1 // loop_body
      %s22 = ssub.s32 %s17, 1
      %s23 = ssub.s32 %s17, 2
      %s24 = sadd.s32 %s17, 1
      %s25 = ssub.s32 %s17, %s24
      %p26 = scmp.eq.s32.totalorder %s25, 0
      %s28 = sadd.s32 %s27, 1
      %s29 = scalar_select %p26, %s27, %s28
      %p32 = pneg %p26
      %p33 = scmp.eq.s32.totalorder %s17, 1
      %p34 = por %p32, %p33
      %p35 = scmp.ne.s32.totalorder %s27, %s30
      %p36 = scmp.eq.s32.totalorder %s17, 0
      %p37 = por %p35, %p36
      %p38 = scmp.ne.s32.totalorder %s27, %s30
      %p39 = scmp.eq.s32.totalorder %s22, 1
      %p40 = por %p38, %p39
      %p41 = scmp.ne.s32.totalorder %s30, %s31
      %p42 = scmp.eq.s32.totalorder %s22, 0
      %p43 = por %p41, %p42
      %p44 = scmp.ne.s32.totalorder %s30, %s31
      %p45 = scmp.eq.s32.totalorder %s23, 1
      %p46 = por %p44, %p45
      %p48 = scmp.ne.s32.totalorder %s31, %s47
      %p49 = scmp.eq.s32.totalorder %s23, 0
      %p50 = por %p48, %p49
      %s51 = ssub.s32 %s17, %s24
      %p52 = scmp.eq.s32.totalorder %s51, 0
      %s54 = sadd.s32 %s53, 1
      %s55 = scalar_select %p52, %s53, %s54
      %p58 = pneg %p52
      %p59 = scmp.eq.s32.totalorder %s17, 1
      %p60 = por %p58, %p59
      %p61 = scmp.ne.s32.totalorder %s53, %s56
      %p62 = scmp.eq.s32.totalorder %s17, 0
      %p63 = por %p61, %p62
      %p64 = scmp.ne.s32.totalorder %s53, %s56
      %p65 = scmp.eq.s32.totalorder %s22, 1
      %p66 = por %p64, %p65
      %p67 = scmp.ne.s32.totalorder %s56, %s57
      %p68 = scmp.eq.s32.totalorder %s22, 0
      %p69 = por %p67, %p68
      %p70 = scmp.ne.s32.totalorder %s56, %s57
      %p71 = scmp.eq.s32.totalorder %s23, 1
      %p72 = por %p70, %p71
      %p74 = scmp.ne.s32.totalorder %s57, %s73
      %p75 = scmp.eq.s32.totalorder %s23, 0
      %p76 = por %p74, %p75
      %s77 = ssub.s32 %s17, %s24
      %p78 = scmp.eq.s32.totalorder %s77, 0
      %s80 = sadd.s32 %s79, 1
      %s81 = scalar_select %p78, %s79, %s80
      %p84 = pneg %p78
      %p85 = scmp.eq.s32.totalorder %s17, 1
      %p86 = por %p84, %p85
      %p87 = scmp.ne.s32.totalorder %s79, %s82
      %p88 = scmp.eq.s32.totalorder %s17, 0
      %p89 = por %p87, %p88
      %p90 = scmp.ne.s32.totalorder %s79, %s82
      %p91 = scmp.eq.s32.totalorder %s22, 1
      %p92 = por %p90, %p91
      %p93 = scmp.ne.s32.totalorder %s82, %s83
      %p94 = scmp.eq.s32.totalorder %s22, 0
      %p95 = por %p93, %p94
      %p96 = scmp.ne.s32.totalorder %s82, %s83
      %p97 = scmp.eq.s32.totalorder %s23, 1
      %p98 = por %p96, %p97
      %p100 = scmp.ne.s32.totalorder %s83, %s99
      %p101 = scmp.eq.s32.totalorder %s23, 0
      %p102 = por %p100, %p101
      %p103 = scmp.le.s32.totalorder 1, %s17
      %p104 = scmp.lt.s32.totalorder %s17, 3
      %p105 = pnand %p103, %p104
      %p106 = pneg %p105
      // Predicated region
      $region9: #{tpu_custom_call.1} parent=5 // pred_check
        _
      $region10: #{tpu_custom_call.1} parent=5 // pred_check_branch
        %108 = sbr.rel (%p105) target = $region12
      $region11: #{tpu_custom_call.1} parent=5 // pred_region
        %s109 = ssub.s32 %s17, 1
      $region12: #{tpu_custom_call.1} parent=5 // pred_fallthru
        _
      %p110 = scmp.lt.s32.totalorder %s17, 2
      // Predicated region
      $region13: #{tpu_custom_call.1} parent=5 // pred_check
        %p111 = pneg %p110
      $region14: #{tpu_custom_call.1} parent=5 // pred_check_branch
        %113 = sbr.rel (%p111) target = $region16
      $region15: #{tpu_custom_call.1} parent=5 // pred_region
        // Predicated region
        $region17: #{tpu_custom_call.1} parent=15 // pred_check
          %p114 = pneg %p37
        $region18: #{tpu_custom_call.1} parent=15 // pred_check_branch
          %116 = sbr.rel (%p114) target = $region20
        $region19: #{tpu_custom_call.1} parent=15 // pred_region
          %s117 = sand.u32 %s27, 1
          %s118 = scalar_lea.sflag [#allocation5], %s117
          %s119 = sand.u32 %s27, 1
          %s120 = smul.addr %s119, 16
          %s121 = scalar_lea.vmem [#allocation4], %s120
          %123 = vsyncadd %s118, 0
          %s124 = smul.addr %s17, 2
          %s125 = smul.addr %s124, 8
          %s126 = scalar_lea.hbm %s0, %s125
          %s127 = sshll.u32 %s126, 4
          %s128 = int_to_ptr.hbm [resolvable:$true] %s127
          %s129 = sshll.u32 %s121, 4
          %s130 = int_to_ptr.vmem [resolvable:$true] %s129
          %135 = dma.hbm_to_vmem [thread:$0]  %s128, 256, %s130, %s118, 128, 128, 8
        $region20: #{tpu_custom_call.1} parent=15 // pred_fallthru
          _
        // Predicated region
        $region21: #{tpu_custom_call.1} parent=15 // pred_check
          %p136 = pneg %p63
        $region22: #{tpu_custom_call.1} parent=15 // pred_check_branch
          %138 = sbr.rel (%p136) target = $region24
        $region23: #{tpu_custom_call.1} parent=15 // pred_region
          %s139 = sand.u32 %s53, 1
          %s140 = scalar_lea.sflag [#allocation8], %s139
          %s141 = sand.u32 %s53, 1
          %s142 = smul.addr %s141, 16
          %s143 = scalar_lea.vmem [#allocation7], %s142
          %145 = vsyncadd %s140, 0
          %s146 = smul.addr %s17, 2
          %s147 = smul.addr %s146, 8
          %s148 = scalar_lea.hbm %s1, %s147
          %s149 = sshll.u32 %s148, 4
          %s150 = int_to_ptr.hbm [resolvable:$true] %s149
          %s151 = sshll.u32 %s143, 4
          %s152 = int_to_ptr.vmem [resolvable:$true] %s151
          %157 = dma.hbm_to_vmem [thread:$0]  %s150, 256, %s152, %s140, 128, 128, 8
        $region24: #{tpu_custom_call.1} parent=15 // pred_fallthru
          _
      $region16: #{tpu_custom_call.1} parent=5 // pred_fallthru
        _
      %p158 = scmp.le.s32.totalorder 1, %s17
      %p159 = scmp.lt.s32.totalorder %s17, 3
      %p160 = pnand %p158, %p159
      %p161 = pneg %p160
      // Predicated region
      $region25: #{tpu_custom_call.1} parent=5 // pred_check
        _
      $region26: #{tpu_custom_call.1} parent=5 // pred_check_branch
        %163 = sbr.rel (%p160) target = $region28
      $region27: #{tpu_custom_call.1} parent=5 // pred_region
        %s164 = ssub.s32 %s17, 1
        %s165 = sand.u32 %s30, 1
        %s166 = scalar_lea.sflag [#allocation5], %s165
        %s167 = sand.u32 %s30, 1
        %s168 = smul.addr %s167, 16
        %s169 = scalar_lea.vmem [#allocation4], %s168
        // Predicated region
        $region29: #{tpu_custom_call.1} parent=27 // pred_check
          %p170 = pneg %p43
        $region30: #{tpu_custom_call.1} parent=27 // pred_check_branch
          %172 = sbr.rel (%p170) target = $region32
        $region31: #{tpu_custom_call.1} parent=27 // pred_region
          %174 = dma.done %s166, 256
        $region32: #{tpu_custom_call.1} parent=27 // pred_fallthru
          _
        %s175 = sand.u32 %s56, 1
        %s176 = scalar_lea.sflag [#allocation8], %s175
        %s177 = sand.u32 %s56, 1
        %s178 = smul.addr %s177, 16
        %s179 = scalar_lea.vmem [#allocation7], %s178
        // Predicated region
        $region33: #{tpu_custom_call.1} parent=27 // pred_check
          %p180 = pneg %p69
        $region34: #{tpu_custom_call.1} parent=27 // pred_check_branch
          %182 = sbr.rel (%p180) target = $region36
        $region35: #{tpu_custom_call.1} parent=27 // pred_region
          %184 = dma.done %s176, 256
        $region36: #{tpu_custom_call.1} parent=27 // pred_fallthru
          _
        %s185 = sand.u32 %s30, 1
        %s186 = scalar_lea.sflag [#allocation5], %s185
        %s187 = sand.u32 %s30, 1
        %s188 = smul.addr %s187, 16
        %s189 = scalar_lea.vmem [#allocation4], %s188
        %p190 = pneg %p43
        %p191 = pneg %p40
        %s192 = sand.u32 %s56, 1
        %s193 = scalar_lea.sflag [#allocation8], %s192
        %s194 = sand.u32 %s56, 1
        %s195 = smul.addr %s194, 16
        %s196 = scalar_lea.vmem [#allocation7], %s195
        %p197 = pneg %p69
        %p198 = pneg %p66
        %p199 = pneg %p95
        %p200 = pneg %p92
        %s201 = sand.u32 %s82, 1
        %s202 = scalar_lea.sflag [#allocation6], %s201
        %s203 = sand.u32 %s82, 1
        %s204 = smul.addr %s203, 4
        %s205 = scalar_lea.vmem [#allocation9], %s204
        %206 = vst [vmem:[#allocation2] sm:$0xff] 0.0
        %207 = vst [vmem:[#allocation2 + $0x8] sm:$0xff] 0.0
        %208 = vst [vmem:[#allocation2 + $0x10] sm:$0xff] 0.0
        %209 = vst [vmem:[#allocation3] sm:$0xff] 0.0
        %210 = vst [vmem:[#allocation3 + $0x8] sm:$0xff] 0.0
        %211 = vst [vmem:[#allocation3 + $0x10] sm:$0xff] 0.0
        %v212 = vld [vmem:[%s169] sm:$0xff]
        %v213 = vld [vmem:[%s169 + $0x8] sm:$0xff]
        %v214 = vld [vmem:[%s179] sm:$0xff]
        %v215 = vld [vmem:[%s179 + $0x8] sm:$0xff]
        %v216 = vsub.f32 %v212, %v214
        %v217 = vsub.f32 %v213, %v215
        %vm218 = vcmask 130048
        %219 = vst.msk [vmem:[#allocation2 + $0x1] sm:$0xff] %vm218, %v216
        %220 = vst.msk [vmem:[#allocation2 + $0x9] sm:$0xff] %vm218, %v217
        %vm221 = vcmp.le.f32.partialorder %v214, 1.0
        %vm222 = vcmp.le.f32.partialorder %v215, 1.0
        %vm223 = vcmp.ge.f32.partialorder %v214, 0.0
        %vm224 = vcmp.ge.f32.partialorder %v215, 0.0
        %vm225 = vmand %vm221, %vm223
        %vm226 = vmand %vm222, %vm224
        %v227 = vsel %vm225, 1.0, 0.0
        %v228 = vsel %vm226, 1.0, 0.0
        %229 = vst.msk [vmem:[#allocation3 + $0x1] sm:$0xff] %vm218, %v227
        %230 = vst.msk [vmem:[#allocation3 + $0x9] sm:$0xff] %vm218, %v228
        %v231 = vld [vmem:[#allocation2] sm:$0xff]
        %v232 = vld [vmem:[#allocation2 + $0x8] sm:$0xff]
        %v233 = vld [vmem:[#allocation2 + $0x10] sm:$0xff]
        %v234 = vld [vmem:[#allocation3] sm:$0xff]
        %v235 = vld [vmem:[#allocation3 + $0x8] sm:$0xff]
        %v236 = vld [vmem:[#allocation3 + $0x10] sm:$0xff]
        %v237 = vrot.slane %v231, 7
        %v238 = vrot.slane %v232, 7
        %v239 = vrot.slane %v233, 7
        %v240 = vlaneseq
        %v241 = vshrl.u32 %v240, 7
        %vm242 = vcmp.lt.s32.totalorder %v241, 1
        %v243 = vsel %vm242, %v238, %v239
        %v244 = vsel %vm242, %v237, %v238
        %v245 = vsel %vm242, %v239, %v237
        %v246 = vrot.slane %v231, 1
        %v247 = vrot.slane %v232, 1
        %v248 = vrot.slane %v233, 1
        %vm249 = vcmp.lt.s32.totalorder %v241, 7
        %v250 = vsel %vm249, %v247, %v248
        %v251 = vsel %vm249, %v246, %v247
        %v252 = vsel %vm249, %v248, %v246
        %v253 = vmul.f32 %v231, 2.0
        %v254 = vmul.f32 %v232, 2.0
        %v255 = vmul.f32 %v233, 2.0
        %v256 = vadd.f32 %v245, %v253
        %v257 = vadd.f32 %v244, %v254
        %v258 = vadd.f32 %v243, %v255
        %v259 = vadd.f32 %v256, %v251
        %v260 = vadd.f32 %v257, %v250
        %v261 = vadd.f32 %v258, %v252
        %v262 = vsub.f32 %v245, %v251
        %v263 = vsub.f32 %v244, %v250
        %v264 = vsub.f32 %v243, %v252
        %265 = vrot.lane.b32.xlu0 %v259, 1
        %v266 = vpop.permute.xlu0 %265
        %267 = vrot.lane.b32.xlu0 %v260, 1
        %v268 = vpop.permute.xlu0 %267
        %269 = vrot.lane.b32.xlu0 %v261, 1
        %v270 = vpop.permute.xlu0 %269
        %271 = vrot.lane.b32.xlu0 %v259, 127
        %v272 = vpop.permute.xlu0 %271
        %273 = vrot.lane.b32.xlu0 %v260, 127
        %v274 = vpop.permute.xlu0 %273
        %275 = vrot.lane.b32.xlu0 %v261, 127
        %v276 = vpop.permute.xlu0 %275
        %277 = vrot.lane.b32.xlu0 %v262, 1
        %v278 = vpop.permute.xlu0 %277
        %279 = vrot.lane.b32.xlu0 %v263, 1
        %v280 = vpop.permute.xlu0 %279
        %281 = vrot.lane.b32.xlu0 %v264, 1
        %v282 = vpop.permute.xlu0 %281
        %283 = vrot.lane.b32.xlu0 %v262, 127
        %v284 = vpop.permute.xlu0 %283
        %285 = vrot.lane.b32.xlu0 %v263, 127
        %v286 = vpop.permute.xlu0 %285
        %287 = vrot.lane.b32.xlu0 %v264, 127
        %v288 = vpop.permute.xlu0 %287
        %v289 = vsub.f32 %v266, %v272
        %v290 = vsub.f32 %v268, %v274
        %v291 = vsub.f32 %v270, %v276
        %v292 = vmul.f32 %v262, 2.0
        %v293 = vmul.f32 %v263, 2.0
        %v294 = vmul.f32 %v264, 2.0
        %v295 = vadd.f32 %v278, %v292
        %v296 = vadd.f32 %v280, %v293
        %v297 = vadd.f32 %v282, %v294
        %v298 = vadd.f32 %v295, %v284
        %v299 = vadd.f32 %v296, %v286
        %v300 = vadd.f32 %v297, %v288
        %v301 = vrot.slane %v234, 7
        %v302 = vrot.slane %v235, 7
        %v303 = vrot.slane %v236, 7
        %v304 = vsel %vm242, %v302, %v303
        %v305 = vsel %vm242, %v301, %v302
        %v306 = vsel %vm242, %v303, %v301
        %v307 = vrot.slane %v234, 1
        %v308 = vrot.slane %v235, 1
        %v309 = vrot.slane %v236, 1
        %v310 = vsel %vm249, %v308, %v309
        %v311 = vsel %vm249, %v307, %v308
        %v312 = vsel %vm249, %v309, %v307
        %v313 = vmul.f32 %v234, 2.0
        %v314 = vmul.f32 %v235, 2.0
        %v315 = vmul.f32 %v236, 2.0
        %v316 = vadd.f32 %v306, %v313
        %v317 = vadd.f32 %v305, %v314
        %v318 = vadd.f32 %v304, %v315
        %v319 = vadd.f32 %v316, %v311
        %v320 = vadd.f32 %v317, %v310
        %v321 = vadd.f32 %v318, %v312
        %v322 = vsub.f32 %v306, %v311
        %v323 = vsub.f32 %v305, %v310
        %v324 = vsub.f32 %v304, %v312
        %325 = vrot.lane.b32.xlu0 %v319, 1
        %v326 = vpop.permute.xlu0 %325
        %327 = vrot.lane.b32.xlu0 %v320, 1
        %v328 = vpop.permute.xlu0 %327
        %329 = vrot.lane.b32.xlu0 %v321, 1
        %v330 = vpop.permute.xlu0 %329
        %331 = vrot.lane.b32.xlu0 %v319, 127
        %v332 = vpop.permute.xlu0 %331
        %333 = vrot.lane.b32.xlu0 %v320, 127
        %v334 = vpop.permute.xlu0 %333
        %335 = vrot.lane.b32.xlu0 %v321, 127
        %v336 = vpop.permute.xlu0 %335
        %337 = vrot.lane.b32.xlu0 %v322, 1
        %v338 = vpop.permute.xlu0 %337
        %339 = vrot.lane.b32.xlu0 %v323, 1
        %v340 = vpop.permute.xlu0 %339
        %341 = vrot.lane.b32.xlu0 %v324, 1
        %v342 = vpop.permute.xlu0 %341
        %343 = vrot.lane.b32.xlu0 %v322, 127
        %v344 = vpop.permute.xlu0 %343
        %345 = vrot.lane.b32.xlu0 %v323, 127
        %v346 = vpop.permute.xlu0 %345
        %347 = vrot.lane.b32.xlu0 %v324, 127
        %v348 = vpop.permute.xlu0 %347
        %v349 = vsub.f32 %v326, %v332
        %v350 = vsub.f32 %v328, %v334
        %v351 = vsub.f32 %v330, %v336
        %v352 = vmul.f32 %v322, 2.0
        %v353 = vmul.f32 %v323, 2.0
        %v354 = vmul.f32 %v324, 2.0
        %v355 = vadd.f32 %v338, %v352
        %v356 = vadd.f32 %v340, %v353
        %v357 = vadd.f32 %v342, %v354
        %v358 = vadd.f32 %v355, %v344
        %v359 = vadd.f32 %v356, %v346
        %v360 = vadd.f32 %v357, %v348
        %vm361 = vcmp.eq.f32.partialorder %v349, 0.0
        %vm362 = vcmp.eq.f32.partialorder %v350, 0.0
        %vm363 = vcmp.eq.f32.partialorder %v351, 0.0
        %vm364 = vcmp.eq.f32.partialorder %v358, 0.0
        %vm365 = vcmp.eq.f32.partialorder %v359, 0.0
        %vm366 = vcmp.eq.f32.partialorder %v360, 0.0
        %vm367 = vmand %vm361, %vm364
        %vm368 = vmand %vm362, %vm365
        %vm369 = vmand %vm363, %vm366
        %v370 = vsel %vm367, %v234, 0.0
        %v371 = vsel %vm368, %v235, 0.0
        %v372 = vsel %vm369, %v236, 0.0
        %v373 = vand.u32 2147483647, %v289
        %v374 = vand.u32 2147483647, %v290
        %v375 = vand.u32 2147483647, %v291
        %v376 = vand.u32 2147483647, %v298
        %v377 = vand.u32 2147483647, %v299
        %v378 = vand.u32 2147483647, %v300
        %v379 = vadd.f32 %v373, %v376
        %v380 = vadd.f32 %v374, %v377
        %v381 = vadd.f32 %v375, %v378
        %v382 = vmul.f32 %v379, 0.125
        %v383 = vmul.f32 %v380, 0.125
        %v384 = vmul.f32 %v381, 0.125
        %v385 = vadd.f32 %v382, 1.0
        %v386 = vadd.f32 %v383, 1.0
        %v387 = vadd.f32 %v384, 1.0
        %v388 = vand.u32 2147483647, %v231
        %v389 = vand.u32 2147483647, %v232
        %v390 = vand.u32 2147483647, %v233
        %v391 = vmul.f32 %v388, %v234
        %v392 = vmul.f32 %v389, %v235
        %v393 = vmul.f32 %v390, %v236
        %v394 = vmul.f32 %v382, %v370
        %v395 = vmul.f32 %v383, %v371
        %v396 = vmul.f32 %v384, %v372
        %v397 = vadd.f32 %v394, %v395
        %v398 = vadd.f32 %v397, %v396
        %v399 = vrot.slane %v398, 4
        %v400 = vadd.f32 %v398, %v399
        %v401 = vrot.slane %v400, 2
        %v402 = vadd.f32 %v400, %v401
        %v403 = vrot.slane %v402, 1
        %v404 = vadd.f32 %v402, %v403
        %405 = vst [vmem:[%s205] sm:$0x1] %v404
        %v406 = vadd.f32 %v370, %v371
        %v407 = vadd.f32 %v406, %v372
        %v408 = vrot.slane %v407, 4
        %v409 = vadd.f32 %v407, %v408
        %v410 = vrot.slane %v409, 2
        %v411 = vadd.f32 %v409, %v410
        %v412 = vrot.slane %v411, 1
        %v413 = vadd.f32 %v411, %v412
        %414 = vst [vmem:[%s205 + $0x1] sm:$0x1] %v413
        %v415 = vmul.f32 %v385, %v391
        %v416 = vmul.f32 %v386, %v392
        %v417 = vmul.f32 %v387, %v393
        %v418 = vadd.f32 %v415, %v416
        %v419 = vadd.f32 %v418, %v417
        %v420 = vrot.slane %v419, 4
        %v421 = vadd.f32 %v419, %v420
        %v422 = vrot.slane %v421, 2
        %v423 = vadd.f32 %v421, %v422
        %v424 = vrot.slane %v423, 1
        %v425 = vadd.f32 %v423, %v424
        %426 = vst [vmem:[%s205 + $0x2] sm:$0x1] %v425
        %v427 = vadd.f32 %v234, %v235
        %v428 = vadd.f32 %v427, %v236
        %v429 = vrot.slane %v428, 4
        %v430 = vadd.f32 %v428, %v429
        %v431 = vrot.slane %v430, 2
        %v432 = vadd.f32 %v430, %v431
        %v433 = vrot.slane %v432, 1
        %v434 = vadd.f32 %v432, %v433
        %435 = vst [vmem:[%s205 + $0x3] sm:$0x1] %v434
        %s436 = sand.u32 %s82, 1
        %s437 = scalar_lea.sflag [#allocation6], %s436
        %s438 = sand.u32 %s82, 1
        %s439 = smul.addr %s438, 4
        %s440 = scalar_lea.vmem [#allocation9], %s439
        // Predicated region
        $region37: #{tpu_custom_call.1} parent=27 // pred_check
          %p441 = pneg %p92
        $region38: #{tpu_custom_call.1} parent=27 // pred_check_branch
          %443 = sbr.rel (%p441) target = $region40
        $region39: #{tpu_custom_call.1} parent=27 // pred_region
          %445 = vsyncadd %s437, 0
          %s446 = smul.addr %s22, 4
          %s447 = scalar_lea.hbm %s2, %s446
          %s449 = sshll.u32 %s440, 4
          %s450 = int_to_ptr.vmem [resolvable:$true] %s449
          %s451 = sshll.u32 %s447, 4
          %s452 = int_to_ptr.hbm [resolvable:$true] %s451
          %454 = dma.vmem_to_hbm [thread:$0]  %s450, 64, %s452, %s437
        $region40: #{tpu_custom_call.1} parent=27 // pred_fallthru
          _
      $region28: #{tpu_custom_call.1} parent=5 // pred_fallthru
        _
      %p455 = scmp.le.s32.totalorder 2, %s17
      // Predicated region
      $region41: #{tpu_custom_call.1} parent=5 // pred_check
        %p456 = pneg %p455
      $region42: #{tpu_custom_call.1} parent=5 // pred_check_branch
        %458 = sbr.rel (%p456) target = $region44
      $region43: #{tpu_custom_call.1} parent=5 // pred_region
        %s459 = ssub.s32 %s17, 2
        // Predicated region
        $region45: #{tpu_custom_call.1} parent=43 // pred_check
          %p460 = pneg %p98
        $region46: #{tpu_custom_call.1} parent=43 // pred_check_branch
          %462 = sbr.rel (%p460) target = $region48
        $region47: #{tpu_custom_call.1} parent=43 // pred_region
          %s463 = sand.u32 %s83, 1
          %s464 = scalar_lea.sflag [#allocation6], %s463
          %s465 = sand.u32 %s83, 1
          %s466 = smul.addr %s465, 4
          %s467 = scalar_lea.vmem [#allocation9], %s466
          %469 = dma.done %s464, 64
        $region48: #{tpu_custom_call.1} parent=43 // pred_fallthru
          _
      $region44: #{tpu_custom_call.1} parent=5 // pred_fallthru
        _
    $region6: #{tpu_custom_call.1} parent=1 // loop_footer
      %s21 = sadd.s32 1, %s17
    $region7: #{tpu_custom_call.1} parent=1 // loop_footer_branch
      %16 = sbr.rel target = $region3
    $region8: #{tpu_custom_call.1} parent=1 // loop_exit
      _
    %470 = vsyncpa [#allocation5], 1
    %s471 = scalar_lea.sflag [#allocation5], 1
    %472 = vsyncpa %s471, 1
    %473 = vsyncpa [#allocation8], 1
    %s474 = scalar_lea.sflag [#allocation8], 1
    %475 = vsyncpa %s474, 1
    %476 = vsyncpa [#allocation6], 1
    %s477 = scalar_lea.sflag [#allocation6], 1
    %478 = vsyncpa %s477, 1

</llo_original>
